<compile_context>
chip_gen: v7x
topology: tpu7x:2x2x1
jax: 0.10.0
libtpu: 0.0.40
codegen_flags: <defaults>
</compile_context>

<pallas_src>
import jax
import jax.numpy as jnp
from jax.experimental import pallas as pl
from jax.experimental.pallas import tpu as pltpu

# MXU operand dtype: bf16 operands + f32 accumulate is 2-4x MXU throughput on
# v5e/v6e/v7x and matches XLA's default TPU precision for f32 convolutions.
# Use jnp.float32 here for bit-faithful f32 matmuls.
MXU_DTYPE = jnp.bfloat16


def conv_block_kernel(x_ref, wb1_ref, sh1_ref, wb2_ref, sh2_ref, o_ref):
    """One grid step = one image; both conv+BN+ReLU layers fused.

    x_ref:   (1, H, W*Cin)        input image, channels flattened onto the lane axis
    wb1_ref: (3, W*Cin,  W*Cout)  layer-1 banded weights (BN scale folded), one per kh
    sh1_ref: (1, W*Cout)          layer-1 folded BN shift, tiled per output column
    wb2_ref: (3, W*Cout, W*Cout)  layer-2 banded weights
    sh2_ref: (1, W*Cout)          layer-2 folded BN shift
    o_ref:   (1, H, W*Cout)       output image (lane-dense: last dim multiple of 128)
    """
    H = x_ref.shape[1]

    def band_conv_bn_relu(x2d, wb_ref, sh_ref):
        # x2d: (H, W*C) in MXU dtype.  One matmul per kernel row; the band matrix
        # already encodes the kw taps and the W-direction zero padding.
        m0 = jnp.dot(x2d, wb_ref[0], preferred_element_type=jnp.float32)  # needs input row h-1
        m1 = jnp.dot(x2d, wb_ref[1], preferred_element_type=jnp.float32)  # needs input row h
        m2 = jnp.dot(x2d, wb_ref[2], preferred_element_type=jnp.float32)  # needs input row h+1
        zrow = jnp.zeros((1, m1.shape[1]), jnp.float32)
        acc = m1
        acc = acc + jnp.concatenate([zrow, m0[:H - 1, :]], axis=0)   # out[h] += m0[h-1]
        acc = acc + jnp.concatenate([m2[1:, :], zrow], axis=0)       # out[h] += m2[h+1]
        # Folded-BN shift + ReLU epilogue in f32 (BN scale already inside wb).
        return jnp.maximum(acc + sh_ref[...], 0.0)

    x2d = x_ref[0].astype(wb1_ref.dtype)                      # (H, W*Cin) -> MXU dtype
    y1 = band_conv_bn_relu(x2d, wb1_ref, sh1_ref)             # (H, W*Cout) f32, stays on-chip
    y2 = band_conv_bn_relu(y1.astype(wb2_ref.dtype), wb2_ref, sh2_ref)
    o_ref[0] = y2.astype(o_ref.dtype)


def conv_block_pallas(x_flat, wb1, sh1, wb2, sh2):
    """x_flat: (B, H, W*Cin)  ->  (B, H, W*Cout)."""
    B, H, WCin = x_flat.shape
    WCout = wb2.shape[2]
    return pl.pallas_call(
        conv_block_kernel,
        out_shape=jax.ShapeDtypeStruct((B, H, WCout), x_flat.dtype),
        grid=(B,),
        in_specs=[
            pl.BlockSpec((1, H, WCin), lambda b: (b, 0, 0)),
            pl.BlockSpec(wb1.shape, lambda b: (0, 0, 0)),
            pl.BlockSpec(sh1.shape, lambda b: (0, 0)),
            pl.BlockSpec(wb2.shape, lambda b: (0, 0, 0)),
            pl.BlockSpec(sh2.shape, lambda b: (0, 0)),
        ],
        out_specs=pl.BlockSpec((1, H, WCout), lambda b: (b, 0, 0)),
        compiler_params=pltpu.CompilerParams(dimension_semantics=("parallel",)),
    )(x_flat, wb1, sh1, wb2, sh2)


def conv_block_forward(x_nchw, params):
    """PyTorch-layout entry point: (B, Cin, H, W) -> (B, Cout, H, W)."""
    (wb1, sh1), (wb2, sh2) = params
    B, Cin, H, W = x_nchw.shape
    Cout = wb2.shape[2] // W
    # NCHW -> NHWC -> (B, H, W*Cin): channels land on the lane axis for the matmul.
    x = jnp.transpose(x_nchw, (0, 2, 3, 1)).reshape(B, H, W * Cin)
    y = conv_block_pallas(x, wb1, sh1, wb2, sh2)               # (B, H, W*Cout)
    return jnp.transpose(y.reshape(B, H, W, Cout), (0, 3, 1, 2))


# ----------------------------- parameter prep ------------------------------

def init_raw_params(key, in_c, out_c):
    """Deterministic synthetic params matching nn.Conv2d / nn.BatchNorm2d (eval)."""
    ks = jax.random.split(key, 6)

    def one_layer(kw, kb, kg, c_in, c_out):
        return dict(
            w=jax.random.normal(kw, (c_out, c_in, 3, 3), jnp.float32) * 0.1,   # OIHW
            b=jax.random.normal(kb, (c_out,), jnp.float32) * 0.1,              # conv bias
            gamma=1.0 + 0.1 * jax.random.normal(kg, (c_out,), jnp.float32),
            beta=jnp.full((c_out,), 0.05, jnp.float32),
            mean=jnp.zeros((c_out,), jnp.float32),
            var=jnp.ones((c_out,), jnp.float32),
        )

    return (one_layer(ks[0], ks[1], ks[2], in_c, out_c),
            one_layer(ks[3], ks[4], ks[5], out_c, out_c))


def _banded_weights(w_hwio, W):
    """(3, 3, C, O) conv weights -> (3, W*C, W*O) block-banded matrices.

    band[kh, j*C + c, w*O + o] = w_hwio[kh, kw, c, o] with kw = j - w + 1 when
    0 <= kw < 3 and 0 <= j < W, else 0.  The zero columns outside the band
    implement the W-direction 'same' padding, so no padded activation copy is
    ever materialized.
    """
    KH, KW, C, O = w_hwio.shape
    band = jnp.zeros((KH, W * C, W * O), jnp.float32)
    for kw in range(KW):
        for w in range(W):
            j = w + kw - 1
            if 0 <= j < W:
                band = band.at[:, j * C:(j + 1) * C, w * O:(w + 1) * O].set(w_hwio[:, kw])
    return band


def prepare_kernel_params(raw_params, W, eps=1e-5, mxu_dtype=MXU_DTYPE):
    """Fold conv bias + eval-mode BN into (banded weights, tiled shift)."""

    def prep(p):
        scale = p["gamma"] / jnp.sqrt(p["var"] + eps)               # (O,)
        shift = (p["b"] - p["mean"]) * scale + p["beta"]            # (O,)
        w_hwio = jnp.transpose(p["w"], (2, 3, 1, 0)) * scale        # OIHW->HWIO, fold BN scale
        out_c = w_hwio.shape[-1]
        band = _banded_weights(w_hwio, W).astype(mxu_dtype)
        shift_tiled = jnp.tile(shift, W).reshape(1, W * out_c).astype(jnp.float32)
        return band, shift_tiled

    l1, l2 = raw_params
    return prep(l1), prep(l2)


# ------------------------------- reference ---------------------------------

def reference_forward(x_nchw, raw_params, eps=1e-5):
    """Pure-JAX reference: Conv2d(3x3, pad=1, bias) -> BatchNorm2d(eval) -> ReLU, twice."""

    def layer(x, p):
        y = jax.lax.conv_general_dilated(
            x, p["w"], window_strides=(1, 1), padding="SAME",
            dimension_numbers=("NCHW", "OIHW", "NCHW"))
        y = y + p["b"][None, :, None, None]
        scale = (p["gamma"] / jnp.sqrt(p["var"] + eps))[None, :, None, None]
        y = (y - p["mean"][None, :, None, None]) * scale + p["beta"][None, :, None, None]
        return jnp.maximum(y, 0.0)

    l1, l2 = raw_params
    return layer(layer(x_nchw, l1), l2)


if __name__ == "__main__":
    key = jax.random.PRNGKey(0)
    k_x, k_p = jax.random.split(key)

    B, IN_C, OUT_C, HW = 2, 4, 8, 16
    x = jax.random.normal(k_x, (B, IN_C, HW, HW), jnp.float32)   # NCHW, like PyTorch

    raw_params = init_raw_params(k_p, IN_C, OUT_C)
    params = prepare_kernel_params(raw_params, W=HW)

    out = jax.jit(conv_block_forward)(x, params)
    out = jax.block_until_ready(out)

    assert out.shape == (B, OUT_C, HW, HW), out.shape
    assert bool(jnp.all(out >= 0.0)), "ReLU output must be non-negative"

    ref = reference_forward(x, raw_params)
    max_err = float(jnp.max(jnp.abs(out - ref)))
    assert max_err < 5e-2, f"mismatch vs pure-JAX reference: max abs err {max_err}"

    print("KERNEL_OK")
</pallas_src>

<mosaic_0001>
module attributes {stable_mosaic.version = 11 : i64} {
  func.func @conv_block_kernel(%arg0: i32, %arg1: memref<1x16x64xf32, #tpu.memory_space<vmem>>, %arg2: memref<3x64x128xbf16, #tpu.memory_space<vmem>>, %arg3: memref<1x128xf32, #tpu.memory_space<vmem>>, %arg4: memref<3x128x128xbf16, #tpu.memory_space<vmem>>, %arg5: memref<1x128xf32, #tpu.memory_space<vmem>>, %arg6: memref<1x16x128xf32, #tpu.memory_space<vmem>>) attributes {dimension_semantics = [#tpu.dimension_semantics<parallel>], iteration_bounds = array<i64: 2>, scalar_prefetch = 0 : i64, scratch_operands = 0 : i64, tpu.core_type = #tpu.core_type<tc>, window_params = [{transform_indices = @transform_0, window_bounds = array<i64: 1, 16, 64>}, {pipeline_mode = #tpu.pipeline_mode<synchronous>, transform_indices = @transform_1, window_bounds = array<i64: 3, 64, 128>}, {pipeline_mode = #tpu.pipeline_mode<synchronous>, transform_indices = @transform_2, window_bounds = array<i64: 1, 128>}, {pipeline_mode = #tpu.pipeline_mode<synchronous>, transform_indices = @transform_3, window_bounds = array<i64: 3, 128, 128>}, {pipeline_mode = #tpu.pipeline_mode<synchronous>, transform_indices = @transform_4, window_bounds = array<i64: 1, 128>}, {transform_indices = @transform_5, window_bounds = array<i64: 1, 16, 128>}]} {
    %c0 = arith.constant 0 : index
    %c0_0 = arith.constant 0 : index
    %c0_1 = arith.constant 0 : index
    %0 = vector.load %arg1[%c0, %c0_0, %c0_1] : memref<1x16x64xf32, #tpu.memory_space<vmem>>, vector<1x16x64xf32>
    %1 = vector.shape_cast %0 : vector<1x16x64xf32> to vector<16x64xf32>
    %2 = arith.truncf %1 : vector<16x64xf32> to vector<16x64xbf16>
    %c0_2 = arith.constant 0 : index
    %c0_3 = arith.constant 0 : index
    %c0_4 = arith.constant 0 : index
    %3 = vector.load %arg2[%c0_2, %c0_3, %c0_4] : memref<3x64x128xbf16, #tpu.memory_space<vmem>>, vector<1x64x128xbf16>
    %4 = vector.shape_cast %3 : vector<1x64x128xbf16> to vector<64x128xbf16>
    %cst = arith.constant dense<0.000000e+00> : vector<16x128xf32>
    %5 = tpu.matmul %2, %4, %cst {dimension_numbers = #tpu.dot_dimension_numbers<[1], [0], [0], [1], [0, 0, 1, 1], [], []>} : vector<16x64xbf16>, vector<64x128xbf16>, vector<16x128xf32> -> vector<16x128xf32>
    %c1 = arith.constant 1 : index
    %c0_5 = arith.constant 0 : index
    %c0_6 = arith.constant 0 : index
    %6 = vector.load %arg2[%c1, %c0_5, %c0_6] : memref<3x64x128xbf16, #tpu.memory_space<vmem>>, vector<1x64x128xbf16>
    %7 = vector.shape_cast %6 : vector<1x64x128xbf16> to vector<64x128xbf16>
    %cst_7 = arith.constant dense<0.000000e+00> : vector<16x128xf32>
    %8 = tpu.matmul %2, %7, %cst_7 {dimension_numbers = #tpu.dot_dimension_numbers<[1], [0], [0], [1], [0, 0, 1, 1], [], []>} : vector<16x64xbf16>, vector<64x128xbf16>, vector<16x128xf32> -> vector<16x128xf32>
    %c2 = arith.constant 2 : index
    %c0_8 = arith.constant 0 : index
    %c0_9 = arith.constant 0 : index
    %9 = vector.load %arg2[%c2, %c0_8, %c0_9] : memref<3x64x128xbf16, #tpu.memory_space<vmem>>, vector<1x64x128xbf16>
    %10 = vector.shape_cast %9 : vector<1x64x128xbf16> to vector<64x128xbf16>
    %cst_10 = arith.constant dense<0.000000e+00> : vector<16x128xf32>
    %11 = tpu.matmul %2, %10, %cst_10 {dimension_numbers = #tpu.dot_dimension_numbers<[1], [0], [0], [1], [0, 0, 1, 1], [], []>} : vector<16x64xbf16>, vector<64x128xbf16>, vector<16x128xf32> -> vector<16x128xf32>
    %cst_11 = arith.constant 0.000000e+00 : f32
    %12 = vector.broadcast %cst_11 : f32 to vector<1x128xf32>
    %13 = vector.extract_strided_slice %5 {offsets = [0, 0], sizes = [15, 128], strides = [1, 1]} : vector<16x128xf32> to vector<15x128xf32>
    %14 = tpu.concatenate %12, %13 in 0 : vector<1x128xf32>, vector<15x128xf32> -> vector<16x128xf32>
    %15 = arith.addf %8, %14 : vector<16x128xf32>
    %16 = vector.extract_strided_slice %11 {offsets = [1, 0], sizes = [15, 128], strides = [1, 1]} : vector<16x128xf32> to vector<15x128xf32>
    %17 = tpu.concatenate %16, %12 in 0 : vector<15x128xf32>, vector<1x128xf32> -> vector<16x128xf32>
    %18 = arith.addf %15, %17 : vector<16x128xf32>
    %c0_12 = arith.constant 0 : index
    %c0_13 = arith.constant 0 : index
    %19 = vector.load %arg3[%c0_12, %c0_13] : memref<1x128xf32, #tpu.memory_space<vmem>>, vector<1x128xf32>
    %20 = vector.broadcast %19 : vector<1x128xf32> to vector<16x128xf32>
    %21 = arith.addf %18, %20 : vector<16x128xf32>
    %cst_14 = arith.constant 0.000000e+00 : f32
    %22 = vector.broadcast %cst_14 : f32 to vector<16x128xf32>
    %23 = arith.maximumf %21, %22 : vector<16x128xf32>
    %24 = arith.truncf %23 : vector<16x128xf32> to vector<16x128xbf16>
    %c0_15 = arith.constant 0 : index
    %c0_16 = arith.constant 0 : index
    %c0_17 = arith.constant 0 : index
    %25 = vector.load %arg4[%c0_15, %c0_16, %c0_17] : memref<3x128x128xbf16, #tpu.memory_space<vmem>>, vector<1x128x128xbf16>
    %26 = vector.shape_cast %25 : vector<1x128x128xbf16> to vector<128x128xbf16>
    %cst_18 = arith.constant dense<0.000000e+00> : vector<16x128xf32>
    %27 = tpu.matmul %24, %26, %cst_18 {dimension_numbers = #tpu.dot_dimension_numbers<[1], [0], [0], [1], [0, 0, 1, 1], [], []>} : vector<16x128xbf16>, vector<128x128xbf16>, vector<16x128xf32> -> vector<16x128xf32>
    %c1_19 = arith.constant 1 : index
    %c0_20 = arith.constant 0 : index
    %c0_21 = arith.constant 0 : index
    %28 = vector.load %arg4[%c1_19, %c0_20, %c0_21] : memref<3x128x128xbf16, #tpu.memory_space<vmem>>, vector<1x128x128xbf16>
    %29 = vector.shape_cast %28 : vector<1x128x128xbf16> to vector<128x128xbf16>
    %cst_22 = arith.constant dense<0.000000e+00> : vector<16x128xf32>
    %30 = tpu.matmul %24, %29, %cst_22 {dimension_numbers = #tpu.dot_dimension_numbers<[1], [0], [0], [1], [0, 0, 1, 1], [], []>} : vector<16x128xbf16>, vector<128x128xbf16>, vector<16x128xf32> -> vector<16x128xf32>
    %c2_23 = arith.constant 2 : index
    %c0_24 = arith.constant 0 : index
    %c0_25 = arith.constant 0 : index
    %31 = vector.load %arg4[%c2_23, %c0_24, %c0_25] : memref<3x128x128xbf16, #tpu.memory_space<vmem>>, vector<1x128x128xbf16>
    %32 = vector.shape_cast %31 : vector<1x128x128xbf16> to vector<128x128xbf16>
    %cst_26 = arith.constant dense<0.000000e+00> : vector<16x128xf32>
    %33 = tpu.matmul %24, %32, %cst_26 {dimension_numbers = #tpu.dot_dimension_numbers<[1], [0], [0], [1], [0, 0, 1, 1], [], []>} : vector<16x128xbf16>, vector<128x128xbf16>, vector<16x128xf32> -> vector<16x128xf32>
    %cst_27 = arith.constant 0.000000e+00 : f32
    %34 = vector.broadcast %cst_27 : f32 to vector<1x128xf32>
    %35 = vector.extract_strided_slice %27 {offsets = [0, 0], sizes = [15, 128], strides = [1, 1]} : vector<16x128xf32> to vector<15x128xf32>
    %36 = tpu.concatenate %34, %35 in 0 : vector<1x128xf32>, vector<15x128xf32> -> vector<16x128xf32>
    %37 = arith.addf %30, %36 : vector<16x128xf32>
    %38 = vector.extract_strided_slice %33 {offsets = [1, 0], sizes = [15, 128], strides = [1, 1]} : vector<16x128xf32> to vector<15x128xf32>
    %39 = tpu.concatenate %38, %34 in 0 : vector<15x128xf32>, vector<1x128xf32> -> vector<16x128xf32>
    %40 = arith.addf %37, %39 : vector<16x128xf32>
    %c0_28 = arith.constant 0 : index
    %c0_29 = arith.constant 0 : index
    %41 = vector.load %arg5[%c0_28, %c0_29] : memref<1x128xf32, #tpu.memory_space<vmem>>, vector<1x128xf32>
    %42 = vector.broadcast %41 : vector<1x128xf32> to vector<16x128xf32>
    %43 = arith.addf %40, %42 : vector<16x128xf32>
    %cst_30 = arith.constant 0.000000e+00 : f32
    %44 = vector.broadcast %cst_30 : f32 to vector<16x128xf32>
    %45 = arith.maximumf %43, %44 : vector<16x128xf32>
    %c0_31 = arith.constant 0 : index
    %c0_32 = arith.constant 0 : index
    %c0_33 = arith.constant 0 : index
    %46 = vector.load %arg6[%c0_31, %c0_32, %c0_33] : memref<1x16x128xf32, #tpu.memory_space<vmem>>, vector<1x16x128xf32>
    %47 = vector.shape_cast %46 : vector<1x16x128xf32> to vector<16x128xf32>
    %48 = vector.shape_cast %45 : vector<16x128xf32> to vector<1x16x128xf32>
    tpu.vector_store %arg6[%c0_31, %c0_32, %c0_33], %48 {strides = array<i32>} : memref<1x16x128xf32, #tpu.memory_space<vmem>>, vector<1x16x128xf32>,
    return
  }
  func.func @transform_0(%arg0: i32) -> (i32, i32, i32) {
    %c0_i32 = arith.constant 0 : i32
    %c0_i32_0 = arith.constant 0 : i32
    %c0_i32_1 = arith.constant 0 : i32
    return %arg0, %c0_i32, %c0_i32_0 : i32, i32, i32
  }
  func.func @transform_1(%arg0: i32) -> (i32, i32, i32) {
    %c0_i32 = arith.constant 0 : i32
    %c0_i32_0 = arith.constant 0 : i32
    %c0_i32_1 = arith.constant 0 : i32
    %c0_i32_2 = arith.constant 0 : i32
    return %c0_i32, %c0_i32_0, %c0_i32_1 : i32, i32, i32
  }
  func.func @transform_2(%arg0: i32) -> (i32, i32) {
    %c0_i32 = arith.constant 0 : i32
    %c0_i32_0 = arith.constant 0 : i32
    %c0_i32_1 = arith.constant 0 : i32
    return %c0_i32, %c0_i32_0 : i32, i32
  }
  func.func @transform_3(%arg0: i32) -> (i32, i32, i32) {
    %c0_i32 = arith.constant 0 : i32
    %c0_i32_0 = arith.constant 0 : i32
    %c0_i32_1 = arith.constant 0 : i32
    %c0_i32_2 = arith.constant 0 : i32
    return %c0_i32, %c0_i32_0, %c0_i32_1 : i32, i32, i32
  }
  func.func @transform_4(%arg0: i32) -> (i32, i32) {
    %c0_i32 = arith.constant 0 : i32
    %c0_i32_0 = arith.constant 0 : i32
    %c0_i32_1 = arith.constant 0 : i32
    return %c0_i32, %c0_i32_0 : i32, i32
  }
  func.func @transform_5(%arg0: i32) -> (i32, i32, i32) {
    %c0_i32 = arith.constant 0 : i32
    %c0_i32_0 = arith.constant 0 : i32
    %c0_i32_1 = arith.constant 0 : i32
    return %arg0, %c0_i32, %c0_i32_0 : i32, i32, i32
  }
}

</mosaic_0001>

<llo_original>
// kernel: conv_block_forward.1
$region0: #{conv_block_forward.1}
  #allocation0 [shape = 'u32[]', space=smem, size = 0x4, offset = 0x4, fixed_abs, tag = 'smem constant byte address 0x4 - core index']
  #allocation1 [shape = 'u32[144,128]{1,0:T(1,128)}', space=vmem, size = 0x12000, scoped, tag = 'internal scratch']
  %s0 = inlined_call_operand.vmem [shape: f32[2,16,64], index: 0, kind: input, shape index: {}]
  %s1 = inlined_call_operand.vmem [shape: bf16[3,64,128], index: 1, kind: input, shape index: {}]
  %s2 = inlined_call_operand.vmem [shape: f32[1,128], index: 2, kind: input, shape index: {}]
  %s3 = inlined_call_operand.vmem [shape: bf16[3,128,128], index: 3, kind: input, shape index: {}]
  %s4 = inlined_call_operand.vmem [shape: f32[1,128], index: 4, kind: input, shape index: {}]
  %s5 = inlined_call_operand.vmem [shape: f32[2,16,128], index: 5, kind: output, shape index: {}]
  %s6 = sld [smem:[#allocation0]]
  $region53: #{conv_block_forward.1} parent=0
    _
  %s8 = ssub.s32 1, %s6
  %s9 = scalar_select 0, %s8, %s6
  loop: start=0, step=1, limit=4
  $region2: #{conv_block_forward.1} parent=0 // loop_pre_header
    _
  $region3: #{conv_block_forward.1} parent=0 // loop_header
    %s11 = sphi 0, %s15
    %p12 = scmp.ge.s32.totalorder %s11, 4
    %s21 = sphi 0, %s23
    %s24 = sphi 0, %s21
    %s25 = sphi 0, %s24
    %s41 = sphi 0, %s25
    %s45 = sphi 0, %s45
    %s47 = sphi 0, %s45
    %s48 = sphi 0, %s47
    %s62 = sphi 0, %s48
    %s66 = sphi 0, %s66
    %s68 = sphi 0, %s66
    %s69 = sphi 0, %s68
    %s83 = sphi 0, %s69
    %s87 = sphi 0, %s87
    %s89 = sphi 0, %s87
    %s90 = sphi 0, %s89
    %s104 = sphi 0, %s90
    %s108 = sphi 0, %s108
    %s110 = sphi 0, %s108
    %s111 = sphi 0, %s110
    %s125 = sphi 0, %s111
    %s131 = sphi 0, %s133
    %s134 = sphi 0, %s131
    %s135 = sphi 0, %s134
    %s151 = sphi 0, %s135
  $region4: #{conv_block_forward.1} parent=0 // loop_header_branch
    %14 = sbr.rel (%p12) target = $region8
  $region5: #{conv_block_forward.1} parent=0 // loop_body
    %s16 = ssub.s32 %s11, 1
    %s17 = ssub.s32 %s11, 2
    %s18 = sadd.s32 %s11, 1
    %s19 = ssub.s32 %s11, %s18
    %p20 = scmp.eq.s32.totalorder %s19, 0
    %s22 = sadd.s32 %s21, 1
    %s23 = scalar_select %p20, %s21, %s22
    %p26 = pneg %p20
    %p27 = scmp.eq.s32.totalorder %s11, 1
    %p28 = por %p26, %p27
    %p29 = scmp.ne.s32.totalorder %s21, %s24
    %p30 = scmp.eq.s32.totalorder %s11, 0
    %p31 = por %p29, %p30
    %p32 = scmp.ne.s32.totalorder %s21, %s24
    %p33 = scmp.eq.s32.totalorder %s16, 1
    %p34 = por %p32, %p33
    %p35 = scmp.ne.s32.totalorder %s24, %s25
    %p36 = scmp.eq.s32.totalorder %s16, 0
    %p37 = por %p35, %p36
    %p38 = scmp.ne.s32.totalorder %s24, %s25
    %p39 = scmp.eq.s32.totalorder %s17, 1
    %p40 = por %p38, %p39
    %p42 = scmp.ne.s32.totalorder %s25, %s41
    %p43 = scmp.eq.s32.totalorder %s17, 0
    %p44 = por %p42, %p43
    %s46 = sadd.s32 %s45, 1
    %p49 = scmp.eq.s32.totalorder %s11, 1
    %p50 = scmp.ne.s32.totalorder %s45, %s47
    %p51 = scmp.eq.s32.totalorder %s11, 0
    %p52 = por %p50, %p51
    %p53 = scmp.ne.s32.totalorder %s45, %s47
    %p54 = scmp.eq.s32.totalorder %s16, 1
    %p55 = por %p53, %p54
    %p56 = scmp.ne.s32.totalorder %s47, %s48
    %p57 = scmp.eq.s32.totalorder %s16, 0
    %p58 = por %p56, %p57
    %p59 = scmp.ne.s32.totalorder %s47, %s48
    %p60 = scmp.eq.s32.totalorder %s17, 1
    %p61 = por %p59, %p60
    %p63 = scmp.ne.s32.totalorder %s48, %s62
    %p64 = scmp.eq.s32.totalorder %s17, 0
    %p65 = por %p63, %p64
    %s67 = sadd.s32 %s66, 1
    %p70 = scmp.eq.s32.totalorder %s11, 1
    %p71 = scmp.ne.s32.totalorder %s66, %s68
    %p72 = scmp.eq.s32.totalorder %s11, 0
    %p73 = por %p71, %p72
    %p74 = scmp.ne.s32.totalorder %s66, %s68
    %p75 = scmp.eq.s32.totalorder %s16, 1
    %p76 = por %p74, %p75
    %p77 = scmp.ne.s32.totalorder %s68, %s69
    %p78 = scmp.eq.s32.totalorder %s16, 0
    %p79 = por %p77, %p78
    %p80 = scmp.ne.s32.totalorder %s68, %s69
    %p81 = scmp.eq.s32.totalorder %s17, 1
    %p82 = por %p80, %p81
    %p84 = scmp.ne.s32.totalorder %s69, %s83
    %p85 = scmp.eq.s32.totalorder %s17, 0
    %p86 = por %p84, %p85
    %s88 = sadd.s32 %s87, 1
    %p91 = scmp.eq.s32.totalorder %s11, 1
    %p92 = scmp.ne.s32.totalorder %s87, %s89
    %p93 = scmp.eq.s32.totalorder %s11, 0
    %p94 = por %p92, %p93
    %p95 = scmp.ne.s32.totalorder %s87, %s89
    %p96 = scmp.eq.s32.totalorder %s16, 1
    %p97 = por %p95, %p96
    %p98 = scmp.ne.s32.totalorder %s89, %s90
    %p99 = scmp.eq.s32.totalorder %s16, 0
    %p100 = por %p98, %p99
    %p101 = scmp.ne.s32.totalorder %s89, %s90
    %p102 = scmp.eq.s32.totalorder %s17, 1
    %p103 = por %p101, %p102
    %p105 = scmp.ne.s32.totalorder %s90, %s104
    %p106 = scmp.eq.s32.totalorder %s17, 0
    %p107 = por %p105, %p106
    %s109 = sadd.s32 %s108, 1
    %p112 = scmp.eq.s32.totalorder %s11, 1
    %p113 = scmp.ne.s32.totalorder %s108, %s110
    %p114 = scmp.eq.s32.totalorder %s11, 0
    %p115 = por %p113, %p114
    %p116 = scmp.ne.s32.totalorder %s108, %s110
    %p117 = scmp.eq.s32.totalorder %s16, 1
    %p118 = por %p116, %p117
    %p119 = scmp.ne.s32.totalorder %s110, %s111
    %p120 = scmp.eq.s32.totalorder %s16, 0
    %p121 = por %p119, %p120
    %p122 = scmp.ne.s32.totalorder %s110, %s111
    %p123 = scmp.eq.s32.totalorder %s17, 1
    %p124 = por %p122, %p123
    %p126 = scmp.ne.s32.totalorder %s111, %s125
    %p127 = scmp.eq.s32.totalorder %s17, 0
    %p128 = por %p126, %p127
    %s129 = ssub.s32 %s11, %s18
    %p130 = scmp.eq.s32.totalorder %s129, 0
    %s132 = sadd.s32 %s131, 1
    %s133 = scalar_select %p130, %s131, %s132
    %p136 = pneg %p130
    %p137 = scmp.eq.s32.totalorder %s11, 1
    %p138 = por %p136, %p137
    %p139 = scmp.ne.s32.totalorder %s131, %s134
    %p140 = scmp.eq.s32.totalorder %s11, 0
    %p141 = por %p139, %p140
    %p142 = scmp.ne.s32.totalorder %s131, %s134
    %p143 = scmp.eq.s32.totalorder %s16, 1
    %p144 = por %p142, %p143
    %p145 = scmp.ne.s32.totalorder %s134, %s135
    %p146 = scmp.eq.s32.totalorder %s16, 0
    %p147 = por %p145, %p146
    %p148 = scmp.ne.s32.totalorder %s134, %s135
    %p149 = scmp.eq.s32.totalorder %s17, 1
    %p150 = por %p148, %p149
    %p152 = scmp.ne.s32.totalorder %s135, %s151
    %p153 = scmp.eq.s32.totalorder %s17, 0
    %p154 = por %p152, %p153
    %p155 = scmp.le.s32.totalorder 1, %s11
    %p156 = scmp.lt.s32.totalorder %s11, 3
    %p157 = pnand %p155, %p156
    %p158 = pneg %p157
    // Predicated region
    $region9: #{conv_block_forward.1} parent=5 // pred_check
      _
    $region10: #{conv_block_forward.1} parent=5 // pred_check_branch
      %160 = sbr.rel (%p157) target = $region12
    $region11: #{conv_block_forward.1} parent=5 // pred_region
      %s161 = ssub.s32 %s11, 1
      // Predicated region
      $region13: #{conv_block_forward.1} parent=11 // pred_check
        %p162 = pneg %p58
      $region14: #{conv_block_forward.1} parent=11 // pred_check_branch
        %164 = sbr.rel (%p162) target = $region16
      $region15: #{conv_block_forward.1} parent=11 // pred_region
        _
      $region16: #{conv_block_forward.1} parent=11 // pred_fallthru
        _
      // Predicated region
      $region17: #{conv_block_forward.1} parent=11 // pred_check
        %p165 = pneg %p79
      $region18: #{conv_block_forward.1} parent=11 // pred_check_branch
        %167 = sbr.rel (%p165) target = $region20
      $region19: #{conv_block_forward.1} parent=11 // pred_region
        _
      $region20: #{conv_block_forward.1} parent=11 // pred_fallthru
        _
      // Predicated region
      $region21: #{conv_block_forward.1} parent=11 // pred_check
        %p168 = pneg %p100
      $region22: #{conv_block_forward.1} parent=11 // pred_check_branch
        %170 = sbr.rel (%p168) target = $region24
      $region23: #{conv_block_forward.1} parent=11 // pred_region
        _
      $region24: #{conv_block_forward.1} parent=11 // pred_fallthru
        _
      // Predicated region
      $region25: #{conv_block_forward.1} parent=11 // pred_check
        %p171 = pneg %p121
      $region26: #{conv_block_forward.1} parent=11 // pred_check_branch
        %173 = sbr.rel (%p171) target = $region28
      $region27: #{conv_block_forward.1} parent=11 // pred_region
        _
      $region28: #{conv_block_forward.1} parent=11 // pred_fallthru
        _
    $region12: #{conv_block_forward.1} parent=5 // pred_fallthru
      _
    %p174 = scmp.lt.s32.totalorder %s11, 2
    // Predicated region
    $region29: #{conv_block_forward.1} parent=5 // pred_check
      %p175 = pneg %p174
    $region30: #{conv_block_forward.1} parent=5 // pred_check_branch
      %177 = sbr.rel (%p175) target = $region32
    $region31: #{conv_block_forward.1} parent=5 // pred_region
      // Predicated region
      $region33: #{conv_block_forward.1} parent=31 // pred_check
        %p178 = pneg %p31
      $region34: #{conv_block_forward.1} parent=31 // pred_check_branch
        %180 = sbr.rel (%p178) target = $region36
      $region35: #{conv_block_forward.1} parent=31 // pred_region
        %p181 = scmp.lt.s32.totalorder %s11, 1
        %s182 = scalar_select %p181, %s11, 1
        %s183 = smul.addr %s182, 2
        %s184 = smul.addr %s183, 8
        %s185 = scalar_lea.vmem %s0, %s184
      $region36: #{conv_block_forward.1} parent=31 // pred_fallthru
        _
    $region32: #{conv_block_forward.1} parent=5 // pred_fallthru
      _
    %p186 = scmp.le.s32.totalorder 1, %s11
    %p187 = scmp.lt.s32.totalorder %s11, 3
    %p188 = pnand %p186, %p187
    %p189 = pneg %p188
    // Predicated region
    $region37: #{conv_block_forward.1} parent=5 // pred_check
      _
    $region38: #{conv_block_forward.1} parent=5 // pred_check_branch
      %191 = sbr.rel (%p188) target = $region40
    $region39: #{conv_block_forward.1} parent=5 // pred_region
      %s192 = ssub.s32 %s11, 1
      %p193 = scmp.lt.s32.totalorder %s16, 1
      %s194 = scalar_select %p193, %s16, 1
      %s195 = smul.addr %s194, 2
      %s196 = smul.addr %s195, 8
      %s197 = scalar_lea.vmem %s0, %s196
      %p198 = pneg %p37
      %p199 = pneg %p34
      %p200 = pneg %p58
      %p201 = pneg %p55
      %p202 = pneg %p79
      %p203 = pneg %p76
      %p204 = pneg %p100
      %p205 = pneg %p97
      %p206 = pneg %p121
      %p207 = pneg %p118
      %p208 = pneg %p147
      %p209 = pneg %p144
      %p210 = scmp.lt.s32.totalorder %s16, 1
      %s211 = scalar_select %p210, %s16, 1
      %s212 = smul.addr %s211, 2
      %s213 = smul.addr %s212, 8
      %s214 = scalar_lea.vmem %s5, %s213
      %p215 = scmp.lt.s32.totalorder %s16, 1
      %s216 = scalar_select %p215, %s16, 1
      %s217 = smul.addr %s216, 2
      %s218 = smul.addr %s217, 8
      %s219 = scalar_lea.vmem %s0, %s218
      %p220 = scmp.lt.s32.totalorder %s16, 1
      %s221 = scalar_select %p220, %s16, 1
      %s222 = smul.addr %s221, 2
      %s223 = smul.addr %s222, 8
      %s224 = scalar_lea.vmem %s5, %s223
      %v226 = vld [vmem:[%s219] sm:$0xff]
      %v227 = vld [vmem:[%s219 + $0x8] sm:$0xff]
      %v228 = vpack.c.bf16 %v227, %v226
      %v229 = vld [vmem:[%s1] sm:$0xf]
      %v230 = vld [vmem:[%s1 + $0x4] sm:$0xf]
      %v231 = vld [vmem:[%s1 + $0x8] sm:$0xf]
      %v232 = vld [vmem:[%s1 + $0xc] sm:$0xf]
      %v233 = vld [vmem:[%s1 + $0x10] sm:$0xf]
      %v234 = vld [vmem:[%s1 + $0x14] sm:$0xf]
      %v235 = vld [vmem:[%s1 + $0x18] sm:$0xf]
      %v236 = vld [vmem:[%s1 + $0x1c] sm:$0xf]
      %v245 = vunpack.c.l.b16 %v229
      %v246 = vunpack.c.l.b16 %v230
      %v247 = vunpack.c.l.b16 %v231
      %v248 = vunpack.c.l.b16 %v232
      %v249 = vunpack.c.l.b16 %v233
      %v250 = vunpack.c.l.b16 %v234
      %v251 = vunpack.c.l.b16 %v235
      %v252 = vunpack.c.l.b16 %v236
      %v253 = vpack.c.b16 %v246, %v245
      %v254 = vpack.c.b16 %v248, %v247
      %v255 = vpack.c.b16 %v250, %v249
      %v256 = vpack.c.b16 %v252, %v251
      %vm261 = vcmask 523264
      %v263 = vsel %vm261, %v228, 0
      %265 = vmatprep.subr.bf16.mxu0 0
      %266 = vmatpush1.bf16.msra.mxu0 %v253
      %267 = vmatprep.subr.bf16.mxu0 0
      %268 = vmatpush1.bf16.msra.mxu0 %v254
      %269 = vmatprep.subr.bf16.mxu0 0
      %270 = vmatpush1.bf16.msra.mxu0 %v255
      %271 = vmatprep.subr.bf16.mxu0 0
      %272 = vmatpush1.bf16.msra.mxu0 %v256
      %273 = vmatprep.subr.bf16.mxu0 0
      %274 = vmatpush1.bf16.msra.mxu0 0
      %275 = vmatprep.subr.bf16.mxu0 0
      %276 = vmatpush1.bf16.msra.mxu0 0
      %277 = vmatprep.subr.bf16.mxu0 0
      %278 = vmatpush1.bf16.msra.mxu0 0
      %279 = vmatprep.subr.bf16.mxu0 0
      %280 = vmatpush1.bf16.msra.mxu0 0
      %281 = vmatprep.subr.bf16.mxu0 0
      %282 = vmatpush1.bf16.msra.mxu0 0
      %283 = vmatprep.subr.bf16.mxu0 0
      %284 = vmatpush1.bf16.msra.mxu0 0
      %285 = vmatprep.subr.bf16.mxu0 0
      %286 = vmatpush1.bf16.msra.mxu0 0
      %287 = vmatprep.subr.bf16.mxu0 0
      %288 = vmatpush1.bf16.msra.mxu0 0
      %289 = vmatprep.subr.bf16.mxu0 0
      %290 = vmatpush1.bf16.msra.mxu0 0
      %291 = vmatprep.subr.bf16.mxu0 0
      %292 = vmatpush1.bf16.msra.mxu0 0
      %293 = vmatprep.subr.bf16.mxu0 0
      %294 = vmatpush1.bf16.msra.mxu0 0
      %295 = vmatprep.subr.bf16.mxu0 0
      %296 = vmatpush1.bf16.msra.mxu0 0
      %297 = vmatprep.mubr.bf16.mxu0 0
      %298 = vmatmul.mubr.bf16.gmra.mrb[0].mxu0 %v263
      %v299 = vpop.f32.mrb[0].mxu0
      %v300 = vadd.f32 0.0, %v299
      %v301 = vpop.f32.mrb[0].mxu0
      %v302 = vpop.f32.mrb[0].mxu0
      %v303 = vadd.f32 0.0, %v302
      %v304 = vpop.f32.mrb[0].mxu0
      %305 = vdwg.mxu0
      %s306 = scalar_lea.vmem %s1, 32
      %v307 = vld [vmem:[%s306] sm:$0xf]
      %v308 = vld [vmem:[%s306 + $0x4] sm:$0xf]
      %v309 = vld [vmem:[%s306 + $0x8] sm:$0xf]
      %v310 = vld [vmem:[%s306 + $0xc] sm:$0xf]
      %v311 = vld [vmem:[%s306 + $0x10] sm:$0xf]
      %v312 = vld [vmem:[%s306 + $0x14] sm:$0xf]
      %v313 = vld [vmem:[%s306 + $0x18] sm:$0xf]
      %v314 = vld [vmem:[%s306 + $0x1c] sm:$0xf]
      %s315 = scalar_lea.vmem %s1, 64
      %v316 = vld [vmem:[%s315] sm:$0xf]
      %v317 = vld [vmem:[%s315 + $0x4] sm:$0xf]
      %v318 = vld [vmem:[%s315 + $0x8] sm:$0xf]
      %v319 = vld [vmem:[%s315 + $0xc] sm:$0xf]
      %v320 = vld [vmem:[%s315 + $0x10] sm:$0xf]
      %v321 = vld [vmem:[%s315 + $0x14] sm:$0xf]
      %v322 = vld [vmem:[%s315 + $0x18] sm:$0xf]
      %v323 = vld [vmem:[%s315 + $0x1c] sm:$0xf]
      %v332 = vunpack.c.l.b16 %v316
      %v333 = vunpack.c.l.b16 %v317
      %v334 = vunpack.c.l.b16 %v318
      %v335 = vunpack.c.l.b16 %v319
      %v336 = vunpack.c.l.b16 %v320
      %v337 = vunpack.c.l.b16 %v321
      %v338 = vunpack.c.l.b16 %v322
      %v339 = vunpack.c.l.b16 %v323
      %v340 = vpack.c.b16 %v333, %v332
      %v341 = vpack.c.b16 %v335, %v334
      %v342 = vpack.c.b16 %v337, %v336
      %v343 = vpack.c.b16 %v339, %v338
      %348 = vmatprep.subr.bf16.mxu0 0
      %349 = vmatpush1.bf16.msra.mxu0 %v340
      %350 = vmatprep.subr.bf16.mxu0 0
      %351 = vmatpush1.bf16.msra.mxu0 %v341
      %352 = vmatprep.subr.bf16.mxu0 0
      %353 = vmatpush1.bf16.msra.mxu0 %v342
      %354 = vmatprep.subr.bf16.mxu0 0
      %355 = vmatpush1.bf16.msra.mxu0 %v343
      %356 = vmatprep.subr.bf16.mxu0 0
      %357 = vmatpush1.bf16.msra.mxu0 0
      %358 = vmatprep.subr.bf16.mxu0 0
      %359 = vmatpush1.bf16.msra.mxu0 0
      %360 = vmatprep.subr.bf16.mxu0 0
      %361 = vmatpush1.bf16.msra.mxu0 0
      %362 = vmatprep.subr.bf16.mxu0 0
      %363 = vmatpush1.bf16.msra.mxu0 0
      %364 = vmatprep.subr.bf16.mxu0 0
      %365 = vmatpush1.bf16.msra.mxu0 0
      %366 = vmatprep.subr.bf16.mxu0 0
      %367 = vmatpush1.bf16.msra.mxu0 0
      %368 = vmatprep.subr.bf16.mxu0 0
      %369 = vmatpush1.bf16.msra.mxu0 0
      %370 = vmatprep.subr.bf16.mxu0 0
      %371 = vmatpush1.bf16.msra.mxu0 0
      %372 = vmatprep.subr.bf16.mxu0 0
      %373 = vmatpush1.bf16.msra.mxu0 0
      %374 = vmatprep.subr.bf16.mxu0 0
      %375 = vmatpush1.bf16.msra.mxu0 0
      %376 = vmatprep.subr.bf16.mxu0 0
      %377 = vmatpush1.bf16.msra.mxu0 0
      %378 = vmatprep.subr.bf16.mxu0 0
      %379 = vmatpush1.bf16.msra.mxu0 0
      %380 = vmatprep.mubr.bf16.mxu0 0
      %381 = vmatmul.mubr.bf16.gmra.mrb[0].mxu0 %v263
      %v382 = vpop.f32.mrb[0].mxu0
      %v383 = vadd.f32 0.0, %v382
      %v384 = vpop.f32.mrb[0].mxu0
      %v385 = vpop.f32.mrb[0].mxu0
      %v386 = vadd.f32 0.0, %v385
      %v387 = vpop.f32.mrb[0].mxu0
      %388 = vdwg.mxu0
      %vm391 = vcmask 1040384
      %v392 = vrot.slane %v300, 7
      %v393 = vrot.slane %v303, 7
      %v394 = vsel %vm391, %v392, %v393
      %v397 = vsel %vm391, 0.0, %v392
      %v406 = vunpack.c.l.b16 %v307
      %v407 = vunpack.c.l.b16 %v308
      %v408 = vunpack.c.l.b16 %v309
      %v409 = vunpack.c.l.b16 %v310
      %v410 = vunpack.c.l.b16 %v311
      %v411 = vunpack.c.l.b16 %v312
      %v412 = vunpack.c.l.b16 %v313
      %v413 = vunpack.c.l.b16 %v314
      %v414 = vpack.c.b16 %v407, %v406
      %v415 = vpack.c.b16 %v409, %v408
      %v416 = vpack.c.b16 %v411, %v410
      %v417 = vpack.c.b16 %v413, %v412
      %422 = vmatprep.subr.bf16.mxu0 0
      %423 = vmatpush1.bf16.msra.mxu0 %v414
      %424 = vmatprep.subr.bf16.mxu0 0
      %425 = vmatpush1.bf16.msra.mxu0 %v415
      %426 = vmatprep.subr.bf16.mxu0 0
      %427 = vmatpush1.bf16.msra.mxu0 %v416
      %428 = vmatprep.subr.bf16.mxu0 0
      %429 = vmatpush1.bf16.msra.mxu0 %v417
      %430 = vmatprep.subr.bf16.mxu0 0
      %431 = vmatpush1.bf16.msra.mxu0 0
      %432 = vmatprep.subr.bf16.mxu0 0
      %433 = vmatpush1.bf16.msra.mxu0 0
      %434 = vmatprep.subr.bf16.mxu0 0
      %435 = vmatpush1.bf16.msra.mxu0 0
      %436 = vmatprep.subr.bf16.mxu0 0
      %437 = vmatpush1.bf16.msra.mxu0 0
      %438 = vmatprep.subr.bf16.mxu0 0
      %439 = vmatpush1.bf16.msra.mxu0 0
      %440 = vmatprep.subr.bf16.mxu0 0
      %441 = vmatpush1.bf16.msra.mxu0 0
      %442 = vmatprep.subr.bf16.mxu0 0
      %443 = vmatpush1.bf16.msra.mxu0 0
      %444 = vmatprep.subr.bf16.mxu0 0
      %445 = vmatpush1.bf16.msra.mxu0 0
      %446 = vmatprep.subr.bf16.mxu0 0
      %447 = vmatpush1.bf16.msra.mxu0 0
      %448 = vmatprep.subr.bf16.mxu0 0
      %449 = vmatpush1.bf16.msra.mxu0 0
      %450 = vmatprep.subr.bf16.mxu0 0
      %451 = vmatpush1.bf16.msra.mxu0 0
      %452 = vmatprep.subr.bf16.mxu0 0
      %453 = vmatpush1.bf16.msra.mxu0 0
      %454 = vmatprep.mubr.bf16.mxu0 0
      %455 = vmatmul.mubr.bf16.gmra.mrb[0].mxu0 %v263
      %v456 = vpop.f32.mrb[0].mxu0
      %v457 = vadd.f32 %v397, %v456
      %v458 = vpop.f32.mrb[0].mxu0
      %v459 = vpop.f32.mrb[0].mxu0
      %v460 = vadd.f32 %v394, %v459
      %v461 = vpop.f32.mrb[0].mxu0
      %462 = vdwg.mxu0
      %vm465 = vcmask 1046528
      %v466 = vrot.slane %v383, 1
      %v467 = vrot.slane %v386, 1
      %v468 = vsel %vm465, %v466, %v467
      %v471 = vsel %vm465, %v467, 0.0
      %v472 = vadd.f32 %v457, %v468
      %v473 = vadd.f32 %v460, %v471
      %v474 = vld [vmem:[%s2] sm:$0x1]
      %v476 = vlaneseq
      %v477 = vshrl.u32 %v476, 7
      %v478 = vsub.s32 0, %v477
      %v479 = vrot.slane %v474, %v478
      %v481 = vadd.f32 %v472, %v479
      %v482 = vadd.f32 %v473, %v479
      %v483 = vmax.f32 %v481, 0.0
      %v484 = vmax.f32 %v482, 0.0
      %v485 = vpack.c.bf16 %v484, %v483
      %v486 = vld [vmem:[%s3] sm:$0xf]
      %v487 = vld [vmem:[%s3 + $0x4] sm:$0xf]
      %v488 = vld [vmem:[%s3 + $0x8] sm:$0xf]
      %v489 = vld [vmem:[%s3 + $0xc] sm:$0xf]
      %v490 = vld [vmem:[%s3 + $0x10] sm:$0xf]
      %v491 = vld [vmem:[%s3 + $0x14] sm:$0xf]
      %v492 = vld [vmem:[%s3 + $0x18] sm:$0xf]
      %v493 = vld [vmem:[%s3 + $0x1c] sm:$0xf]
      %v494 = vld [vmem:[%s3 + $0x20] sm:$0xf]
      %v495 = vld [vmem:[%s3 + $0x24] sm:$0xf]
      %v496 = vld [vmem:[%s3 + $0x28] sm:$0xf]
      %v497 = vld [vmem:[%s3 + $0x2c] sm:$0xf]
      %v498 = vld [vmem:[%s3 + $0x30] sm:$0xf]
      %v499 = vld [vmem:[%s3 + $0x34] sm:$0xf]
      %v500 = vld [vmem:[%s3 + $0x38] sm:$0xf]
      %v501 = vld [vmem:[%s3 + $0x3c] sm:$0xf]
      %v518 = vunpack.c.l.b16 %v486
      %v519 = vunpack.c.l.b16 %v487
      %v520 = vunpack.c.l.b16 %v488
      %v521 = vunpack.c.l.b16 %v489
      %v522 = vunpack.c.l.b16 %v490
      %v523 = vunpack.c.l.b16 %v491
      %v524 = vunpack.c.l.b16 %v492
      %v525 = vunpack.c.l.b16 %v493
      %v526 = vunpack.c.l.b16 %v494
      %v527 = vunpack.c.l.b16 %v495
      %v528 = vunpack.c.l.b16 %v496
      %v529 = vunpack.c.l.b16 %v497
      %v530 = vunpack.c.l.b16 %v498
      %v531 = vunpack.c.l.b16 %v499
      %v532 = vunpack.c.l.b16 %v500
      %v533 = vunpack.c.l.b16 %v501
      %v534 = vpack.c.b16 %v519, %v518
      %v535 = vpack.c.b16 %v521, %v520
      %v536 = vpack.c.b16 %v523, %v522
      %v537 = vpack.c.b16 %v525, %v524
      %v538 = vpack.c.b16 %v527, %v526
      %v539 = vpack.c.b16 %v529, %v528
      %v540 = vpack.c.b16 %v531, %v530
      %v541 = vpack.c.b16 %v533, %v532
      %550 = vmatprep.subr.bf16.mxu0 0
      %551 = vmatpush1.bf16.msra.mxu0 %v534
      %552 = vmatprep.subr.bf16.mxu0 0
      %553 = vmatpush1.bf16.msra.mxu0 %v535
      %554 = vmatprep.subr.bf16.mxu0 0
      %555 = vmatpush1.bf16.msra.mxu0 %v536
      %556 = vmatprep.subr.bf16.mxu0 0
      %557 = vmatpush1.bf16.msra.mxu0 %v537
      %558 = vmatprep.subr.bf16.mxu0 0
      %559 = vmatpush1.bf16.msra.mxu0 %v538
      %560 = vmatprep.subr.bf16.mxu0 0
      %561 = vmatpush1.bf16.msra.mxu0 %v539
      %562 = vmatprep.subr.bf16.mxu0 0
      %563 = vmatpush1.bf16.msra.mxu0 %v540
      %564 = vmatprep.subr.bf16.mxu0 0
      %565 = vmatpush1.bf16.msra.mxu0 %v541
      %566 = vmatprep.subr.bf16.mxu0 0
      %567 = vmatpush1.bf16.msra.mxu0 0
      %568 = vmatprep.subr.bf16.mxu0 0
      %569 = vmatpush1.bf16.msra.mxu0 0
      %570 = vmatprep.subr.bf16.mxu0 0
      %571 = vmatpush1.bf16.msra.mxu0 0
      %572 = vmatprep.subr.bf16.mxu0 0
      %573 = vmatpush1.bf16.msra.mxu0 0
      %574 = vmatprep.subr.bf16.mxu0 0
      %575 = vmatpush1.bf16.msra.mxu0 0
      %576 = vmatprep.subr.bf16.mxu0 0
      %577 = vmatpush1.bf16.msra.mxu0 0
      %578 = vmatprep.subr.bf16.mxu0 0
      %579 = vmatpush1.bf16.msra.mxu0 0
      %580 = vmatprep.subr.bf16.mxu0 0
      %581 = vmatpush1.bf16.msra.mxu0 0
      %582 = vmatprep.mubr.bf16.mxu0 0
      %583 = vmatmul.mubr.bf16.gmra.mrb[0].mxu0 %v485
      %v584 = vpop.f32.mrb[0].mxu0
      %v585 = vadd.f32 0.0, %v584
      %v586 = vpop.f32.mrb[0].mxu0
      %v587 = vpop.f32.mrb[0].mxu0
      %v588 = vadd.f32 0.0, %v587
      %v589 = vpop.f32.mrb[0].mxu0
      %590 = vdwg.mxu0
      %s591 = scalar_lea.vmem %s3, 64
      %v592 = vld [vmem:[%s591] sm:$0xf]
      %v593 = vld [vmem:[%s591 + $0x4] sm:$0xf]
      %v594 = vld [vmem:[%s591 + $0x8] sm:$0xf]
      %v595 = vld [vmem:[%s591 + $0xc] sm:$0xf]
      %v596 = vld [vmem:[%s591 + $0x10] sm:$0xf]
      %v597 = vld [vmem:[%s591 + $0x14] sm:$0xf]
      %v598 = vld [vmem:[%s591 + $0x18] sm:$0xf]
      %v599 = vld [vmem:[%s591 + $0x1c] sm:$0xf]
      %v600 = vld [vmem:[%s591 + $0x20] sm:$0xf]
      %v601 = vld [vmem:[%s591 + $0x24] sm:$0xf]
      %v602 = vld [vmem:[%s591 + $0x28] sm:$0xf]
      %v603 = vld [vmem:[%s591 + $0x2c] sm:$0xf]
      %v604 = vld [vmem:[%s591 + $0x30] sm:$0xf]
      %v605 = vld [vmem:[%s591 + $0x34] sm:$0xf]
      %v606 = vld [vmem:[%s591 + $0x38] sm:$0xf]
      %v607 = vld [vmem:[%s591 + $0x3c] sm:$0xf]
      %s608 = scalar_lea.vmem %s3, 128
      %v609 = vld [vmem:[%s608] sm:$0xf]
      %v610 = vld [vmem:[%s608 + $0x4] sm:$0xf]
      %v611 = vld [vmem:[%s608 + $0x8] sm:$0xf]
      %v612 = vld [vmem:[%s608 + $0xc] sm:$0xf]
      %v613 = vld [vmem:[%s608 + $0x10] sm:$0xf]
      %v614 = vld [vmem:[%s608 + $0x14] sm:$0xf]
      %v615 = vld [vmem:[%s608 + $0x18] sm:$0xf]
      %v616 = vld [vmem:[%s608 + $0x1c] sm:$0xf]
      %v617 = vld [vmem:[%s608 + $0x20] sm:$0xf]
      %v618 = vld [vmem:[%s608 + $0x24] sm:$0xf]
      %v619 = vld [vmem:[%s608 + $0x28] sm:$0xf]
      %v620 = vld [vmem:[%s608 + $0x2c] sm:$0xf]
      %v621 = vld [vmem:[%s608 + $0x30] sm:$0xf]
      %v622 = vld [vmem:[%s608 + $0x34] sm:$0xf]
      %v623 = vld [vmem:[%s608 + $0x38] sm:$0xf]
      %v624 = vld [vmem:[%s608 + $0x3c] sm:$0xf]
      %v641 = vunpack.c.l.b16 %v609
      %v642 = vunpack.c.l.b16 %v610
      %v643 = vunpack.c.l.b16 %v611
      %v644 = vunpack.c.l.b16 %v612
      %v645 = vunpack.c.l.b16 %v613
      %v646 = vunpack.c.l.b16 %v614
      %v647 = vunpack.c.l.b16 %v615
      %v648 = vunpack.c.l.b16 %v616
      %v649 = vunpack.c.l.b16 %v617
      %v650 = vunpack.c.l.b16 %v618
      %v651 = vunpack.c.l.b16 %v619
      %v652 = vunpack.c.l.b16 %v620
      %v653 = vunpack.c.l.b16 %v621
      %v654 = vunpack.c.l.b16 %v622
      %v655 = vunpack.c.l.b16 %v623
      %v656 = vunpack.c.l.b16 %v624
      %v657 = vpack.c.b16 %v642, %v641
      %v658 = vpack.c.b16 %v644, %v643
      %v659 = vpack.c.b16 %v646, %v645
      %v660 = vpack.c.b16 %v648, %v647
      %v661 = vpack.c.b16 %v650, %v649
      %v662 = vpack.c.b16 %v652, %v651
      %v663 = vpack.c.b16 %v654, %v653
      %v664 = vpack.c.b16 %v656, %v655
      %673 = vmatprep.subr.bf16.mxu0 0
      %674 = vmatpush1.bf16.msra.mxu0 %v657
      %675 = vmatprep.subr.bf16.mxu0 0
      %676 = vmatpush1.bf16.msra.mxu0 %v658
      %677 = vmatprep.subr.bf16.mxu0 0
      %678 = vmatpush1.bf16.msra.mxu0 %v659
      %679 = vmatprep.subr.bf16.mxu0 0
      %680 = vmatpush1.bf16.msra.mxu0 %v660
      %681 = vmatprep.subr.bf16.mxu0 0
      %682 = vmatpush1.bf16.msra.mxu0 %v661
      %683 = vmatprep.subr.bf16.mxu0 0
      %684 = vmatpush1.bf16.msra.mxu0 %v662
      %685 = vmatprep.subr.bf16.mxu0 0
      %686 = vmatpush1.bf16.msra.mxu0 %v663
      %687 = vmatprep.subr.bf16.mxu0 0
      %688 = vmatpush1.bf16.msra.mxu0 %v664
      %689 = vmatprep.subr.bf16.mxu0 0
      %690 = vmatpush1.bf16.msra.mxu0 0
      %691 = vmatprep.subr.bf16.mxu0 0
      %692 = vmatpush1.bf16.msra.mxu0 0
      %693 = vmatprep.subr.bf16.mxu0 0
      %694 = vmatpush1.bf16.msra.mxu0 0
      %695 = vmatprep.subr.bf16.mxu0 0
      %696 = vmatpush1.bf16.msra.mxu0 0
      %697 = vmatprep.subr.bf16.mxu0 0
      %698 = vmatpush1.bf16.msra.mxu0 0
      %699 = vmatprep.subr.bf16.mxu0 0
      %700 = vmatpush1.bf16.msra.mxu0 0
      %701 = vmatprep.subr.bf16.mxu0 0
      %702 = vmatpush1.bf16.msra.mxu0 0
      %703 = vmatprep.subr.bf16.mxu0 0
      %704 = vmatpush1.bf16.msra.mxu0 0
      %705 = vmatprep.mubr.bf16.mxu0 0
      %706 = vmatmul.mubr.bf16.gmra.mrb[0].mxu0 %v485
      %v707 = vpop.f32.mrb[0].mxu0
      %v708 = vadd.f32 0.0, %v707
      %v709 = vpop.f32.mrb[0].mxu0
      %v710 = vpop.f32.mrb[0].mxu0
      %v711 = vadd.f32 0.0, %v710
      %v712 = vpop.f32.mrb[0].mxu0
      %713 = vdwg.mxu0
      %v716 = vrot.slane %v585, 7
      %v717 = vrot.slane %v588, 7
      %v718 = vsel %vm391, %v716, %v717
      %v721 = vsel %vm391, 0.0, %v716
      %v738 = vunpack.c.l.b16 %v592
      %v739 = vunpack.c.l.b16 %v593
      %v740 = vunpack.c.l.b16 %v594
      %v741 = vunpack.c.l.b16 %v595
      %v742 = vunpack.c.l.b16 %v596
      %v743 = vunpack.c.l.b16 %v597
      %v744 = vunpack.c.l.b16 %v598
      %v745 = vunpack.c.l.b16 %v599
      %v746 = vunpack.c.l.b16 %v600
      %v747 = vunpack.c.l.b16 %v601
      %v748 = vunpack.c.l.b16 %v602
      %v749 = vunpack.c.l.b16 %v603
      %v750 = vunpack.c.l.b16 %v604
      %v751 = vunpack.c.l.b16 %v605
      %v752 = vunpack.c.l.b16 %v606
      %v753 = vunpack.c.l.b16 %v607
      %v754 = vpack.c.b16 %v739, %v738
      %v755 = vpack.c.b16 %v741, %v740
      %v756 = vpack.c.b16 %v743, %v742
      %v757 = vpack.c.b16 %v745, %v744
      %v758 = vpack.c.b16 %v747, %v746
      %v759 = vpack.c.b16 %v749, %v748
      %v760 = vpack.c.b16 %v751, %v750
      %v761 = vpack.c.b16 %v753, %v752
      %770 = vmatprep.subr.bf16.mxu0 0
      %771 = vmatpush1.bf16.msra.mxu0 %v754
      %772 = vmatprep.subr.bf16.mxu0 0
      %773 = vmatpush1.bf16.msra.mxu0 %v755
      %774 = vmatprep.subr.bf16.mxu0 0
      %775 = vmatpush1.bf16.msra.mxu0 %v756
      %776 = vmatprep.subr.bf16.mxu0 0
      %777 = vmatpush1.bf16.msra.mxu0 %v757
      %778 = vmatprep.subr.bf16.mxu0 0
      %779 = vmatpush1.bf16.msra.mxu0 %v758
      %780 = vmatprep.subr.bf16.mxu0 0
      %781 = vmatpush1.bf16.msra.mxu0 %v759
      %782 = vmatprep.subr.bf16.mxu0 0
      %783 = vmatpush1.bf16.msra.mxu0 %v760
      %784 = vmatprep.subr.bf16.mxu0 0
      %785 = vmatpush1.bf16.msra.mxu0 %v761
      %786 = vmatprep.subr.bf16.mxu0 0
      %787 = vmatpush1.bf16.msra.mxu0 0
      %788 = vmatprep.subr.bf16.mxu0 0
      %789 = vmatpush1.bf16.msra.mxu0 0
      %790 = vmatprep.subr.bf16.mxu0 0
      %791 = vmatpush1.bf16.msra.mxu0 0
      %792 = vmatprep.subr.bf16.mxu0 0
      %793 = vmatpush1.bf16.msra.mxu0 0
      %794 = vmatprep.subr.bf16.mxu0 0
      %795 = vmatpush1.bf16.msra.mxu0 0
      %796 = vmatprep.subr.bf16.mxu0 0
      %797 = vmatpush1.bf16.msra.mxu0 0
      %798 = vmatprep.subr.bf16.mxu0 0
      %799 = vmatpush1.bf16.msra.mxu0 0
      %800 = vmatprep.subr.bf16.mxu0 0
      %801 = vmatpush1.bf16.msra.mxu0 0
      %802 = vmatprep.mubr.bf16.mxu0 0
      %803 = vmatmul.mubr.bf16.gmra.mrb[0].mxu0 %v485
      %v804 = vpop.f32.mrb[0].mxu0
      %v805 = vadd.f32 %v721, %v804
      %v806 = vpop.f32.mrb[0].mxu0
      %v807 = vpop.f32.mrb[0].mxu0
      %v808 = vadd.f32 %v718, %v807
      %v809 = vpop.f32.mrb[0].mxu0
      %810 = vdwg.mxu0
      %v813 = vrot.slane %v708, 1
      %v814 = vrot.slane %v711, 1
      %v815 = vsel %vm465, %v813, %v814
      %v818 = vsel %vm465, %v814, 0.0
      %v819 = vadd.f32 %v805, %v815
      %v820 = vadd.f32 %v808, %v818
      %v821 = vld [vmem:[%s4] sm:$0x1]
      %v823 = vlaneseq
      %v824 = vshrl.u32 %v823, 7
      %v825 = vsub.s32 0, %v824
      %v826 = vrot.slane %v821, %v825
      %v828 = vadd.f32 %v819, %v826
      %v829 = vadd.f32 %v820, %v826
      %v830 = vmax.f32 %v828, 0.0
      %v831 = vmax.f32 %v829, 0.0
      %832 = vst [vmem:[%s224] sm:$0xff] %v830
      %833 = vst [vmem:[%s224 + $0x8] sm:$0xff] %v831
      %p834 = scmp.lt.s32.totalorder %s16, 1
      %s835 = scalar_select %p834, %s16, 1
      %s836 = smul.addr %s835, 2
      %s837 = smul.addr %s836, 8
      %s838 = scalar_lea.vmem %s5, %s837
      // Predicated region
      $region41: #{conv_block_forward.1} parent=39 // pred_check
        %p839 = pneg %p144
      $region42: #{conv_block_forward.1} parent=39 // pred_check_branch
        %841 = sbr.rel (%p839) target = $region44
      $region43: #{conv_block_forward.1} parent=39 // pred_region
        _
      $region44: #{conv_block_forward.1} parent=39 // pred_fallthru
        _
    $region40: #{conv_block_forward.1} parent=5 // pred_fallthru
      _
    %p842 = scmp.le.s32.totalorder 2, %s11
    // Predicated region
    $region45: #{conv_block_forward.1} parent=5 // pred_check
      %p843 = pneg %p842
    $region46: #{conv_block_forward.1} parent=5 // pred_check_branch
      %845 = sbr.rel (%p843) target = $region48
    $region47: #{conv_block_forward.1} parent=5 // pred_region
      %s846 = ssub.s32 %s11, 2
      // Predicated region
      $region49: #{conv_block_forward.1} parent=47 // pred_check
        %p847 = pneg %p150
      $region50: #{conv_block_forward.1} parent=47 // pred_check_branch
        %849 = sbr.rel (%p847) target = $region52
      $region51: #{conv_block_forward.1} parent=47 // pred_region
        %p850 = scmp.lt.s32.totalorder %s17, 1
        %s851 = scalar_select %p850, %s17, 1
        %s852 = smul.addr %s851, 2
        %s853 = smul.addr %s852, 8
        %s854 = scalar_lea.vmem %s5, %s853
      $region52: #{conv_block_forward.1} parent=47 // pred_fallthru
        _
    $region48: #{conv_block_forward.1} parent=5 // pred_fallthru
      _
  $region6: #{conv_block_forward.1} parent=0 // loop_footer
    %s15 = sadd.s32 1, %s11
  $region7: #{conv_block_forward.1} parent=0 // loop_footer_branch
    %10 = sbr.rel target = $region3
  $region8: #{conv_block_forward.1} parent=0 // loop_exit
    _

</llo_original>
